<compile_context>
chip_gen: v7x
topology: tpu7x:2x2x1
jax: 0.10.0
libtpu: 0.0.40
codegen_flags: <defaults>
</compile_context>

<pallas_src>
import jax
import jax.numpy as jnp
import numpy as np
from jax.experimental import pallas as pl
from jax.experimental.pallas import tpu as pltpu

EPS = 1e-5                 # nn.LayerNorm / nn.BatchNorm1d default eps
H1, H2, H3 = 256, 128, 64  # hidden sizes fixed by the module
EMB_DIM = 32
EMB_TOTAL = 128            # 4 embeddings x 32
SLAB_W = 256               # packed per-feature parameter slab width


def _round_up(n, m):
    return (n + m - 1) // m * m


def _ln_stats(x):
    mu = jnp.mean(x, axis=-1, keepdims=True)
    var = jnp.mean((x - mu) ** 2, axis=-1, keepdims=True)
    return mu, jax.lax.rsqrt(var + EPS)


def _layernorm(x, gamma, beta):
    mu, rstd = _ln_stats(x)
    return (x - mu) * rstd * gamma + beta


# --------------------------------------------------------------------------- #
# Kernel
# --------------------------------------------------------------------------- #
def ptsmlp_kernel(x_ref, idx_ref, w1x_ref, w1e_ref, w2_ref, w3_ref,
                  tab_ref, slab_ref, o_ref):
    TB, F = x_ref.shape
    VPAD = tab_ref.shape[0]

    # Per-feature parameter slab (f32), packed in the wrapper. Static slices.
    in_g = slab_ref[0:1, :F]
    in_b = slab_ref[1:2, :F]
    b1 = slab_ref[2:3, :H1]
    ln1g = slab_ref[3:4, :H1]
    ln1b = slab_ref[4:5, :H1]
    b2 = slab_ref[5:6, :H2]
    ln2g = slab_ref[6:7, :H2]
    ln2b = slab_ref[7:8, :H2]
    b3 = slab_ref[8:9, :H3]
    ln3g = slab_ref[9:10, :H3]
    ln3b = slab_ref[10:11, :H3]
    w4 = slab_ref[11:12, :H3]
    b4 = slab_ref[12:13, 0:1]

    x = jnp.nan_to_num(x_ref[...])            # f32 (TB, F)

    # Embedding lookups fused in-kernel: indices arrive pre-clamped and
    # pre-offset into the packed table; build a multi-hot row selector and do
    # a tiny MXU matmul against the VMEM-resident combined table.
    idx = idx_ref[...]                                        # (TB, 4) int32
    iot = jax.lax.broadcasted_iota(jnp.int32, (TB, VPAD), 1)
    hot = ((iot == idx[:, 0:1]) | (iot == idx[:, 1:2]) |
           (iot == idx[:, 2:3]) | (iot == idx[:, 3:4]))       # (TB, VPAD) bool
    hot_b = hot.astype(jnp.float32).astype(jnp.bfloat16)
    emb = jnp.dot(hot_b, tab_ref[...],
                  preferred_element_type=jnp.float32)          # (TB, 128) f32

    # input_norm over the numeric features only.
    mu, rstd = _ln_stats(x)
    xa = (x - mu) * rstd * in_g + in_b

    # combined_norm over concat([xa, emb], -1) without materializing the concat.
    # Its affine (cg, cb) is folded into fc1 in the wrapper, so only normalize.
    f_tot = F + EMB_TOTAL
    s = jnp.sum(xa, -1, keepdims=True) + jnp.sum(emb, -1, keepdims=True)
    mu2 = s * (1.0 / f_tot)
    var2 = (jnp.sum((xa - mu2) ** 2, -1, keepdims=True) +
            jnp.sum((emb - mu2) ** 2, -1, keepdims=True)) * (1.0 / f_tot)
    rstd2 = jax.lax.rsqrt(var2 + EPS)
    xn = ((xa - mu2) * rstd2).astype(jnp.bfloat16)
    en = ((emb - mu2) * rstd2).astype(jnp.bfloat16)

    # fc1 split over the two concat halves; combined-norm affine + eval BN1
    # are pre-folded into w1x/w1e/b1. bf16 MXU operands, f32 accumulation.
    h1 = (jnp.dot(xn, w1x_ref[...], preferred_element_type=jnp.float32) +
          jnp.dot(en, w1e_ref[...], preferred_element_type=jnp.float32) + b1)
    mu, rstd = _ln_stats(h1)
    h1 = jnp.maximum((h1 - mu) * rstd * ln1g + ln1b, 0.0)

    h2 = jnp.dot(h1.astype(jnp.bfloat16), w2_ref[...],
                 preferred_element_type=jnp.float32) + b2
    mu, rstd = _ln_stats(h2)
    h2 = jnp.maximum((h2 - mu) * rstd * ln2g + ln2b, 0.0)

    h3 = jnp.dot(h2.astype(jnp.bfloat16), w3_ref[...],
                 preferred_element_type=jnp.float32) + b3
    mu, rstd = _ln_stats(h3)
    h3 = jnp.maximum((h3 - mu) * rstd * ln3g + ln3b, 0.0)

    # output Linear(64, 1): VPU multiply + lane reduction instead of an N=1 matmul.
    out = jnp.sum(h3 * w4, axis=-1, keepdims=True) + b4
    o_ref[...] = jnp.maximum(out, 0.0)


# --------------------------------------------------------------------------- #
# Parameters
# --------------------------------------------------------------------------- #
def init_params(key, input_size, vocab_sizes, embedding_dim=32):
    ks = jax.random.split(key, 8)
    f_tot = input_size + 4 * embedding_dim

    def kaiming(k, fan_in, fan_out):
        # kaiming_normal_(fan_in, relu) * 0.8, stored as (in, out) for x @ W.
        return (jax.random.normal(k, (fan_in, fan_out), jnp.float32)
                * np.float32(np.sqrt(2.0 / fan_in) * 0.8))

    def bn_scale(n):  # gamma / sqrt(running_var + eps), defaults gamma=1, var=1
        return jnp.full((n,), 1.0 / np.sqrt(1.0 + EPS), jnp.float32)

    return {
        'pos_emb': 0.01 * jax.random.normal(ks[0], (vocab_sizes['Pos'], embedding_dim), jnp.float32),
        'team_emb': 0.01 * jax.random.normal(ks[1], (vocab_sizes['Team'], embedding_dim), jnp.float32),
        'opp_emb': 0.01 * jax.random.normal(ks[2], (vocab_sizes['Opp'], embedding_dim), jnp.float32),
        'pos_opp_emb': 0.01 * jax.random.normal(ks[3], (vocab_sizes['Pos_Opp'], embedding_dim), jnp.float32),
        'in_g': jnp.ones((input_size,), jnp.float32), 'in_b': jnp.zeros((input_size,), jnp.float32),
        'cg': jnp.ones((f_tot,), jnp.float32), 'cb': jnp.zeros((f_tot,), jnp.float32),
        'w1': kaiming(ks[4], f_tot, H1), 'b1': jnp.zeros((H1,), jnp.float32),
        'bn1_s': bn_scale(H1), 'bn1_h': jnp.zeros((H1,), jnp.float32),
        'ln1_g': jnp.ones((H1,), jnp.float32), 'ln1_b': jnp.zeros((H1,), jnp.float32),
        'w2': kaiming(ks[5], H1, H2), 'b2': jnp.zeros((H2,), jnp.float32),
        'bn2_s': bn_scale(H2), 'bn2_h': jnp.zeros((H2,), jnp.float32),
        'ln2_g': jnp.ones((H2,), jnp.float32), 'ln2_b': jnp.zeros((H2,), jnp.float32),
        'w3': kaiming(ks[6], H2, H3), 'b3': jnp.zeros((H3,), jnp.float32),
        'bn3_s': bn_scale(H3), 'bn3_h': jnp.zeros((H3,), jnp.float32),
        'ln3_g': jnp.ones((H3,), jnp.float32), 'ln3_b': jnp.zeros((H3,), jnp.float32),
        'w4': kaiming(ks[7], H3, 1), 'b4': jnp.zeros((1,), jnp.float32),
    }


def fold_params(p, input_size, vocab_sizes, embedding_dim=32):
    """Exact algebraic folds done once in the wrapper:
       * combined-LayerNorm affine (cg, cb) folded into fc1
       * eval-mode BatchNorm scale/shift folded into fc1/fc2/fc3
       * per-feature vectors packed into one (13, 256) f32 slab
       * 4 embedding tables packed into one (Vtot_padded, 128) bf16 table,
         each table occupying its own 32-column slice at its row offset
       * matmul weights stored as bf16 (f32 accumulation in-kernel).
    # TODO(synk): when loading a trained checkpoint, bn*_s / bn*_h must be the
    # actual running-stat fold (gamma/sqrt(var+eps), beta - mean*scale)."""
    F = input_size
    w1 = p['w1'] * p['cg'][:, None] * p['bn1_s'][None, :]
    b1 = (p['b1'] + p['cb'] @ p['w1']) * p['bn1_s'] + p['bn1_h']
    w2 = p['w2'] * p['bn2_s'][None, :]
    b2 = p['b2'] * p['bn2_s'] + p['bn2_h']
    w3 = p['w3'] * p['bn3_s'][None, :]
    b3 = p['b3'] * p['bn3_s'] + p['bn3_h']

    def row(v):
        return jnp.pad(v.astype(jnp.float32), (0, SLAB_W - v.shape[0]))[None, :]

    slab = jnp.concatenate([
        row(p['in_g']), row(p['in_b']),
        row(b1), row(p['ln1_g']), row(p['ln1_b']),
        row(b2), row(p['ln2_g']), row(p['ln2_b']),
        row(b3), row(p['ln3_g']), row(p['ln3_b']),
        row(p['w4'][:, 0]), row(jnp.broadcast_to(p['b4'], (H3,))),
    ], axis=0)

    # Packed embedding table (block layout: table t in rows [off_t, off_t+V_t),
    # columns [t*32, (t+1)*32); zeros elsewhere).
    tables = [p['pos_emb'], p['team_emb'], p['opp_emb'], p['pos_opp_emb']]
    v_tot = sum(int(t.shape[0]) for t in tables)
    v_pad = _round_up(v_tot, 16)
    tab = jnp.zeros((v_pad, 4 * embedding_dim), jnp.float32)
    off = 0
    for t_i, t in enumerate(tables):
        tab = tab.at[off:off + t.shape[0],
                     t_i * embedding_dim:(t_i + 1) * embedding_dim].set(t)
        off += int(t.shape[0])

    return {
        'w1x': w1[:F].astype(jnp.bfloat16),
        'w1e': w1[F:].astype(jnp.bfloat16),
        'w2': w2.astype(jnp.bfloat16),
        'w3': w3.astype(jnp.bfloat16),
        'slab': slab,
        'table': tab.astype(jnp.bfloat16),
        'pos_emb': p['pos_emb'], 'team_emb': p['team_emb'],
        'opp_emb': p['opp_emb'], 'pos_opp_emb': p['pos_opp_emb'],
    }


# --------------------------------------------------------------------------- #
# Wrapper
# --------------------------------------------------------------------------- #
def _prep_indices(categorical_indices, vocab_sizes):
    """Clamp each categorical column to [0, vocab-1] and shift into the packed
    combined-table row range (tiny (B,4) int32 op)."""
    sizes = [vocab_sizes['Pos'], vocab_sizes['Team'],
             vocab_sizes['Opp'], vocab_sizes['Pos_Opp']]
    maxv = jnp.array([s - 1 for s in sizes], jnp.int32)
    offs = jnp.array(np.concatenate([[0], np.cumsum(sizes[:-1])]).astype(np.int32))
    idx = jnp.clip(categorical_indices.astype(jnp.int32), 0, maxv[None, :])
    return idx + offs[None, :]


def _gather_embeddings(categorical_indices, p, vocab_sizes):
    # Used only by the pure-JAX reference.
    max_vals = jnp.array([vocab_sizes['Pos'] - 1, vocab_sizes['Team'] - 1,
                          vocab_sizes['Opp'] - 1, vocab_sizes['Pos_Opp'] - 1], jnp.int32)
    idx = jnp.clip(categorical_indices, 0, max_vals[None, :])
    return jnp.concatenate([
        jnp.take(p['pos_emb'], idx[:, 0], axis=0),
        jnp.take(p['team_emb'], idx[:, 1], axis=0),
        jnp.take(p['opp_emb'], idx[:, 2], axis=0),
        jnp.take(p['pos_opp_emb'], idx[:, 3], axis=0),
    ], axis=1)


def _default_block_batch():
    # Generation-aware batch tile: larger on 128 MiB-VMEM parts (v5e/v6e),
    # smaller on v7x (64 MiB per TensorCore).
    try:
        vmem = pltpu.get_tpu_info().vmem_capacity_bytes
    except Exception:
        vmem = 64 << 20
    return 2048 if vmem >= (128 << 20) else 1024


def ptsmlp_forward(x, categorical_indices, folded, vocab_sizes, *, block_batch=None):
    x = x.astype(jnp.float32)
    B, F = x.shape

    idx = _prep_indices(categorical_indices, vocab_sizes)

    if block_batch is None:
        block_batch = _default_block_batch()
    TB = min(block_batch, _round_up(B, 16))
    Bp = _round_up(B, TB)
    if Bp != B:
        x = jnp.pad(x, ((0, Bp - B), (0, 0)))
        idx = jnp.pad(idx, ((0, Bp - B), (0, 0)))

    w1x, w1e, w2, w3, tab, slab = (folded['w1x'], folded['w1e'], folded['w2'],
                                   folded['w3'], folded['table'], folded['slab'])

    # Resident weights: constant index_map -> DMA'd once, reused every grid step.
    const = lambda shape: pl.BlockSpec(shape, lambda i: (0, 0))

    weight_bytes = (w1x.size + w1e.size + w2.size + w3.size + tab.size) * 2 + slab.size * 4
    flops = 2 * Bp * (tab.shape[0] * EMB_TOTAL + (F + EMB_TOTAL) * H1
                      + H1 * H2 + H2 * H3 + H3)
    bytes_accessed = Bp * (F * 4 + 4 * 4 + 4) + weight_bytes
    # Double-buffered x/idx/out tiles (idx/out pad to 128 lanes in VMEM) plus
    # generous headroom for the (TB, 256)-class f32 intermediates.
    vmem_est = TB * (2 * F * 4 + 2 * 512 + 2 * 512 + 8192) + weight_bytes + (4 << 20)
    vmem_limit = int(min(max(vmem_est, 32 << 20), 100 << 20))

    out = pl.pallas_call(
        ptsmlp_kernel,
        out_shape=jax.ShapeDtypeStruct((Bp, 1), jnp.float32),
        grid=(Bp // TB,),
        in_specs=[
            pl.BlockSpec((TB, F), lambda i: (i, 0)),
            pl.BlockSpec((TB, 4), lambda i: (i, 0)),
            const(w1x.shape), const(w1e.shape), const(w2.shape), const(w3.shape),
            const(tab.shape), const(slab.shape),
        ],
        out_specs=pl.BlockSpec((TB, 1), lambda i: (i, 0)),
        compiler_params=pltpu.CompilerParams(
            dimension_semantics=("parallel",),
            vmem_limit_bytes=vmem_limit),
        cost_estimate=pl.CostEstimate(
            flops=int(flops),
            transcendentals=int(5 * Bp),
            bytes_accessed=int(bytes_accessed)),
    )(x, idx, w1x, w1e, w2, w3, tab, slab)
    return out[:B]


# --------------------------------------------------------------------------- #
# Pure-JAX f32 reference (PyTorch eval-mode semantics) for correctness checking
# --------------------------------------------------------------------------- #
def reference_forward(x, categorical_indices, p, vocab_sizes):
    x = jnp.nan_to_num(x.astype(jnp.float32))
    emb = _gather_embeddings(categorical_indices, p, vocab_sizes).astype(jnp.float32)
    xa = _layernorm(x, p['in_g'], p['in_b'])
    v = jnp.concatenate([xa, emb], axis=1)
    v = _layernorm(v, p['cg'], p['cb'])
    h1 = v @ p['w1'] + p['b1']
    h1 = jnp.maximum(_layernorm(h1 * p['bn1_s'] + p['bn1_h'], p['ln1_g'], p['ln1_b']), 0.0)
    h2 = h1 @ p['w2'] + p['b2']
    h2 = jnp.maximum(_layernorm(h2 * p['bn2_s'] + p['bn2_h'], p['ln2_g'], p['ln2_b']), 0.0)
    h3 = h2 @ p['w3'] + p['b3']
    h3 = jnp.maximum(_layernorm(h3 * p['bn3_s'] + p['bn3_h'], p['ln3_g'], p['ln3_b']), 0.0)
    return jnp.maximum(h3 @ p['w4'] + p['b4'], 0.0)


if __name__ == "__main__":
    B, input_size, embedding_dim = 8, 32, 32
    vocab_sizes = {'Pos': 5, 'Team': 8, 'Opp': 8, 'Pos_Opp': 16}

    key = jax.random.PRNGKey(0)
    kx, kc, kp = jax.random.split(key, 3)
    x = jax.random.normal(kx, (B, input_size), jnp.float32)
    categorical_indices = jax.random.randint(kc, (B, 4), 0, 20).astype(jnp.int32)

    params = init_params(kp, input_size, vocab_sizes, embedding_dim)
    folded = fold_params(params, input_size, vocab_sizes, embedding_dim)

    out = ptsmlp_forward(x, categorical_indices, folded, vocab_sizes)
    out = jax.block_until_ready(out)

    ref = reference_forward(x, categorical_indices, params, vocab_sizes)
    # bf16 MXU operands / bf16 embedding table (f32 accumulation) vs. pure-f32
    # reference: tolerance sized for bf16 rounding through three LayerNorm'd layers.
    np.testing.assert_allclose(np.asarray(out), np.asarray(ref), rtol=2e-2, atol=2e-2)

    print("KERNEL_OK")
</pallas_src>

<mosaic_0001>
module attributes {stable_mosaic.version = 11 : i64} {
  func.func @ptsmlp_kernel(%arg0: i32, %arg1: memref<16x32xf32, #tpu.memory_space<vmem>>, %arg2: memref<16x4xi32, #tpu.memory_space<vmem>>, %arg3: memref<32x256xbf16, #tpu.memory_space<vmem>>, %arg4: memref<128x256xbf16, #tpu.memory_space<vmem>>, %arg5: memref<256x128xbf16, #tpu.memory_space<vmem>>, %arg6: memref<128x64xbf16, #tpu.memory_space<vmem>>, %arg7: memref<48x128xbf16, #tpu.memory_space<vmem>>, %arg8: memref<13x256xf32, #tpu.memory_space<vmem>>, %arg9: memref<16x1xf32, #tpu.memory_space<vmem>>) attributes {dimension_semantics = [#tpu.dimension_semantics<parallel>], iteration_bounds = array<i64: 1>, scalar_prefetch = 0 : i64, scratch_operands = 0 : i64, tpu.core_type = #tpu.core_type<tc>, window_params = [{transform_indices = @transform_0, window_bounds = array<i64: 16, 32>}, {transform_indices = @transform_1, window_bounds = array<i64: 16, 4>}, {pipeline_mode = #tpu.pipeline_mode<synchronous>, transform_indices = @transform_2, window_bounds = array<i64: 32, 256>}, {pipeline_mode = #tpu.pipeline_mode<synchronous>, transform_indices = @transform_3, window_bounds = array<i64: 128, 256>}, {pipeline_mode = #tpu.pipeline_mode<synchronous>, transform_indices = @transform_4, window_bounds = array<i64: 256, 128>}, {pipeline_mode = #tpu.pipeline_mode<synchronous>, transform_indices = @transform_5, window_bounds = array<i64: 128, 64>}, {pipeline_mode = #tpu.pipeline_mode<synchronous>, transform_indices = @transform_6, window_bounds = array<i64: 48, 128>}, {pipeline_mode = #tpu.pipeline_mode<synchronous>, transform_indices = @transform_7, window_bounds = array<i64: 13, 256>}, {transform_indices = @transform_8, window_bounds = array<i64: 16, 1>}]} {
    %c0 = arith.constant 0 : index
    %c0_0 = arith.constant 0 : index
    %0 = vector.load %arg8[%c0, %c0_0] : memref<13x256xf32, #tpu.memory_space<vmem>>, vector<1x32xf32>
    %c1 = arith.constant 1 : index
    %c0_1 = arith.constant 0 : index
    %1 = vector.load %arg8[%c1, %c0_1] : memref<13x256xf32, #tpu.memory_space<vmem>>, vector<1x32xf32>
    %c2 = arith.constant 2 : index
    %c0_2 = arith.constant 0 : index
    %2 = vector.load %arg8[%c2, %c0_2] : memref<13x256xf32, #tpu.memory_space<vmem>>, vector<1x256xf32>
    %c3 = arith.constant 3 : index
    %c0_3 = arith.constant 0 : index
    %3 = vector.load %arg8[%c3, %c0_3] : memref<13x256xf32, #tpu.memory_space<vmem>>, vector<1x256xf32>
    %c4 = arith.constant 4 : index
    %c0_4 = arith.constant 0 : index
    %4 = vector.load %arg8[%c4, %c0_4] : memref<13x256xf32, #tpu.memory_space<vmem>>, vector<1x256xf32>
    %c5 = arith.constant 5 : index
    %c0_5 = arith.constant 0 : index
    %5 = vector.load %arg8[%c5, %c0_5] : memref<13x256xf32, #tpu.memory_space<vmem>>, vector<1x128xf32>
    %c6 = arith.constant 6 : index
    %c0_6 = arith.constant 0 : index
    %6 = vector.load %arg8[%c6, %c0_6] : memref<13x256xf32, #tpu.memory_space<vmem>>, vector<1x128xf32>
    %c7 = arith.constant 7 : index
    %c0_7 = arith.constant 0 : index
    %7 = vector.load %arg8[%c7, %c0_7] : memref<13x256xf32, #tpu.memory_space<vmem>>, vector<1x128xf32>
    %c8 = arith.constant 8 : index
    %c0_8 = arith.constant 0 : index
    %8 = vector.load %arg8[%c8, %c0_8] : memref<13x256xf32, #tpu.memory_space<vmem>>, vector<1x64xf32>
    %c9 = arith.constant 9 : index
    %c0_9 = arith.constant 0 : index
    %9 = vector.load %arg8[%c9, %c0_9] : memref<13x256xf32, #tpu.memory_space<vmem>>, vector<1x64xf32>
    %c10 = arith.constant 10 : index
    %c0_10 = arith.constant 0 : index
    %10 = vector.load %arg8[%c10, %c0_10] : memref<13x256xf32, #tpu.memory_space<vmem>>, vector<1x64xf32>
    %c11 = arith.constant 11 : index
    %c0_11 = arith.constant 0 : index
    %11 = vector.load %arg8[%c11, %c0_11] : memref<13x256xf32, #tpu.memory_space<vmem>>, vector<1x64xf32>
    %c12 = arith.constant 12 : index
    %c0_12 = arith.constant 0 : index
    %12 = vector.load %arg8[%c12, %c0_12] : memref<13x256xf32, #tpu.memory_space<vmem>>, vector<1x1xf32>
    %c0_13 = arith.constant 0 : index
    %c0_14 = arith.constant 0 : index
    %13 = vector.load %arg1[%c0_13, %c0_14] : memref<16x32xf32, #tpu.memory_space<vmem>>, vector<16x32xf32>
    %14 = arith.cmpf one, %13, %13 : vector<16x32xf32>
    %cst = arith.constant 0.000000e+00 : f32
    %15 = vector.broadcast %cst : f32 to vector<16x32xf32>
    %16 = arith.select %14, %15, %13 : vector<16x32xi1>, vector<16x32xf32>
    %cst_15 = arith.constant 0x7F800000 : f32
    %17 = vector.broadcast %cst_15 : f32 to vector<16x32xf32>
    %18 = arith.cmpf oeq, %16, %17 : vector<16x32xf32>
    %cst_16 = arith.constant 3.40282347E+38 : f32
    %19 = vector.broadcast %cst_16 : f32 to vector<16x32xf32>
    %20 = arith.select %18, %19, %16 : vector<16x32xi1>, vector<16x32xf32>
    %cst_17 = arith.constant 0xFF800000 : f32
    %21 = vector.broadcast %cst_17 : f32 to vector<16x32xf32>
    %22 = arith.cmpf oeq, %20, %21 : vector<16x32xf32>
    %cst_18 = arith.constant -3.40282347E+38 : f32
    %23 = vector.broadcast %cst_18 : f32 to vector<16x32xf32>
    %24 = arith.select %22, %23, %20 : vector<16x32xi1>, vector<16x32xf32>
    %c0_19 = arith.constant 0 : index
    %c0_20 = arith.constant 0 : index
    %25 = vector.load %arg2[%c0_19, %c0_20] : memref<16x4xi32, #tpu.memory_space<vmem>>, vector<16x4xi32>
    %26 = tpu.iota {dimensions = array<i32: 1>} : vector<16x48xi32>
    %27 = vector.extract_strided_slice %25 {offsets = [0, 0], sizes = [16, 1], strides = [1, 1]} : vector<16x4xi32> to vector<16x1xi32>
    %28 = vector.broadcast %27 : vector<16x1xi32> to vector<16x48xi32>
    %29 = arith.cmpi eq, %26, %28 : vector<16x48xi32>
    %30 = vector.extract_strided_slice %25 {offsets = [0, 1], sizes = [16, 1], strides = [1, 1]} : vector<16x4xi32> to vector<16x1xi32>
    %31 = vector.broadcast %30 : vector<16x1xi32> to vector<16x48xi32>
    %32 = arith.cmpi eq, %26, %31 : vector<16x48xi32>
    %33 = arith.ori %29, %32 : vector<16x48xi1>
    %34 = vector.extract_strided_slice %25 {offsets = [0, 2], sizes = [16, 1], strides = [1, 1]} : vector<16x4xi32> to vector<16x1xi32>
    %35 = vector.broadcast %34 : vector<16x1xi32> to vector<16x48xi32>
    %36 = arith.cmpi eq, %26, %35 : vector<16x48xi32>
    %37 = arith.ori %33, %36 : vector<16x48xi1>
    %38 = vector.extract_strided_slice %25 {offsets = [0, 3], sizes = [16, 1], strides = [1, 1]} : vector<16x4xi32> to vector<16x1xi32>
    %39 = vector.broadcast %38 : vector<16x1xi32> to vector<16x48xi32>
    %40 = arith.cmpi eq, %26, %39 : vector<16x48xi32>
    %41 = arith.ori %37, %40 : vector<16x48xi1>
    %42 = arith.extui %41 : vector<16x48xi1> to vector<16x48xi32>
    %43 = arith.sitofp %42 : vector<16x48xi32> to vector<16x48xf32>
    %44 = arith.truncf %43 : vector<16x48xf32> to vector<16x48xbf16>
    %c0_21 = arith.constant 0 : index
    %c0_22 = arith.constant 0 : index
    %45 = vector.load %arg7[%c0_21, %c0_22] : memref<48x128xbf16, #tpu.memory_space<vmem>>, vector<48x128xbf16>
    %cst_23 = arith.constant dense<0.000000e+00> : vector<16x128xf32>
    %46 = tpu.matmul %44, %45, %cst_23 {dimension_numbers = #tpu.dot_dimension_numbers<[1], [0], [0], [1], [0, 0, 1, 1], [], []>} : vector<16x48xbf16>, vector<48x128xbf16>, vector<16x128xf32> -> vector<16x128xf32>
    %cst_24 = arith.constant dense<0.000000e+00> : vector<16xf32>
    %47 = vector.multi_reduction <add>, %24, %cst_24 [1] : vector<16x32xf32> to vector<16xf32>
    %48 = vector.shape_cast %47 : vector<16xf32> to vector<16x1xf32>
    %cst_25 = arith.constant 3.200000e+01 : f32
    %49 = vector.broadcast %cst_25 : f32 to vector<16x1xf32>
    %50 = arith.divf %48, %49 : vector<16x1xf32>
    %51 = vector.broadcast %50 : vector<16x1xf32> to vector<16x32xf32>
    %52 = arith.subf %24, %51 : vector<16x32xf32>
    %53 = arith.mulf %52, %52 : vector<16x32xf32>
    %cst_26 = arith.constant dense<0.000000e+00> : vector<16xf32>
    %54 = vector.multi_reduction <add>, %53, %cst_26 [1] : vector<16x32xf32> to vector<16xf32>
    %55 = vector.shape_cast %54 : vector<16xf32> to vector<16x1xf32>
    %cst_27 = arith.constant 3.200000e+01 : f32
    %56 = vector.broadcast %cst_27 : f32 to vector<16x1xf32>
    %57 = arith.divf %55, %56 : vector<16x1xf32>
    %cst_28 = arith.constant 9.99999974E-6 : f32
    %58 = vector.broadcast %cst_28 : f32 to vector<16x1xf32>
    %59 = arith.addf %57, %58 : vector<16x1xf32>
    %60 = math.rsqrt %59 : vector<16x1xf32>
    %61 = vector.broadcast %50 : vector<16x1xf32> to vector<16x32xf32>
    %62 = arith.subf %24, %61 : vector<16x32xf32>
    %63 = vector.broadcast %60 : vector<16x1xf32> to vector<16x32xf32>
    %64 = arith.mulf %62, %63 : vector<16x32xf32>
    %65 = vector.broadcast %0 : vector<1x32xf32> to vector<16x32xf32>
    %66 = arith.mulf %64, %65 : vector<16x32xf32>
    %67 = vector.broadcast %1 : vector<1x32xf32> to vector<16x32xf32>
    %68 = arith.addf %66, %67 : vector<16x32xf32>
    %cst_29 = arith.constant dense<0.000000e+00> : vector<16xf32>
    %69 = vector.multi_reduction <add>, %68, %cst_29 [1] : vector<16x32xf32> to vector<16xf32>
    %70 = vector.shape_cast %69 : vector<16xf32> to vector<16x1xf32>
    %cst_30 = arith.constant dense<0.000000e+00> : vector<16xf32>
    %71 = vector.multi_reduction <add>, %46, %cst_30 [1] : vector<16x128xf32> to vector<16xf32>
    %72 = vector.shape_cast %71 : vector<16xf32> to vector<16x1xf32>
    %73 = arith.addf %70, %72 : vector<16x1xf32>
    %cst_31 = arith.constant 6.250000e-03 : f32
    %74 = vector.broadcast %cst_31 : f32 to vector<16x1xf32>
    %75 = arith.mulf %73, %74 : vector<16x1xf32>
    %76 = vector.broadcast %75 : vector<16x1xf32> to vector<16x32xf32>
    %77 = arith.subf %68, %76 : vector<16x32xf32>
    %78 = arith.mulf %77, %77 : vector<16x32xf32>
    %cst_32 = arith.constant dense<0.000000e+00> : vector<16xf32>
    %79 = vector.multi_reduction <add>, %78, %cst_32 [1] : vector<16x32xf32> to vector<16xf32>
    %80 = vector.shape_cast %79 : vector<16xf32> to vector<16x1xf32>
    %81 = vector.broadcast %75 : vector<16x1xf32> to vector<16x128xf32>
    %82 = arith.subf %46, %81 : vector<16x128xf32>
    %83 = arith.mulf %82, %82 : vector<16x128xf32>
    %cst_33 = arith.constant dense<0.000000e+00> : vector<16xf32>
    %84 = vector.multi_reduction <add>, %83, %cst_33 [1] : vector<16x128xf32> to vector<16xf32>
    %85 = vector.shape_cast %84 : vector<16xf32> to vector<16x1xf32>
    %86 = arith.addf %80, %85 : vector<16x1xf32>
    %cst_34 = arith.constant 6.250000e-03 : f32
    %87 = vector.broadcast %cst_34 : f32 to vector<16x1xf32>
    %88 = arith.mulf %86, %87 : vector<16x1xf32>
    %cst_35 = arith.constant 9.99999974E-6 : f32
    %89 = vector.broadcast %cst_35 : f32 to vector<16x1xf32>
    %90 = arith.addf %88, %89 : vector<16x1xf32>
    %91 = math.rsqrt %90 : vector<16x1xf32>
    %92 = vector.broadcast %75 : vector<16x1xf32> to vector<16x32xf32>
    %93 = arith.subf %68, %92 : vector<16x32xf32>
    %94 = vector.broadcast %91 : vector<16x1xf32> to vector<16x32xf32>
    %95 = arith.mulf %93, %94 : vector<16x32xf32>
    %96 = arith.truncf %95 : vector<16x32xf32> to vector<16x32xbf16>
    %97 = vector.broadcast %75 : vector<16x1xf32> to vector<16x128xf32>
    %98 = arith.subf %46, %97 : vector<16x128xf32>
    %99 = vector.broadcast %91 : vector<16x1xf32> to vector<16x128xf32>
    %100 = arith.mulf %98, %99 : vector<16x128xf32>
    %101 = arith.truncf %100 : vector<16x128xf32> to vector<16x128xbf16>
    %c0_36 = arith.constant 0 : index
    %c0_37 = arith.constant 0 : index
    %102 = vector.load %arg3[%c0_36, %c0_37] : memref<32x256xbf16, #tpu.memory_space<vmem>>, vector<32x256xbf16>
    %cst_38 = arith.constant dense<0.000000e+00> : vector<16x256xf32>
    %103 = tpu.matmul %96, %102, %cst_38 {dimension_numbers = #tpu.dot_dimension_numbers<[1], [0], [0], [1], [0, 0, 1, 1], [], []>} : vector<16x32xbf16>, vector<32x256xbf16>, vector<16x256xf32> -> vector<16x256xf32>
    %c0_39 = arith.constant 0 : index
    %c0_40 = arith.constant 0 : index
    %104 = vector.load %arg4[%c0_39, %c0_40] : memref<128x256xbf16, #tpu.memory_space<vmem>>, vector<128x256xbf16>
    %cst_41 = arith.constant dense<0.000000e+00> : vector<16x256xf32>
    %105 = tpu.matmul %101, %104, %cst_41 {dimension_numbers = #tpu.dot_dimension_numbers<[1], [0], [0], [1], [0, 0, 1, 1], [], []>} : vector<16x128xbf16>, vector<128x256xbf16>, vector<16x256xf32> -> vector<16x256xf32>
    %106 = arith.addf %103, %105 : vector<16x256xf32>
    %107 = vector.broadcast %2 : vector<1x256xf32> to vector<16x256xf32>
    %108 = arith.addf %106, %107 : vector<16x256xf32>
    %cst_42 = arith.constant dense<0.000000e+00> : vector<16xf32>
    %109 = vector.multi_reduction <add>, %108, %cst_42 [1] : vector<16x256xf32> to vector<16xf32>
    %110 = vector.shape_cast %109 : vector<16xf32> to vector<16x1xf32>
    %cst_43 = arith.constant 2.560000e+02 : f32
    %111 = vector.broadcast %cst_43 : f32 to vector<16x1xf32>
    %112 = arith.divf %110, %111 : vector<16x1xf32>
    %113 = vector.broadcast %112 : vector<16x1xf32> to vector<16x256xf32>
    %114 = arith.subf %108, %113 : vector<16x256xf32>
    %115 = arith.mulf %114, %114 : vector<16x256xf32>
    %cst_44 = arith.constant dense<0.000000e+00> : vector<16xf32>
    %116 = vector.multi_reduction <add>, %115, %cst_44 [1] : vector<16x256xf32> to vector<16xf32>
    %117 = vector.shape_cast %116 : vector<16xf32> to vector<16x1xf32>
    %cst_45 = arith.constant 2.560000e+02 : f32
    %118 = vector.broadcast %cst_45 : f32 to vector<16x1xf32>
    %119 = arith.divf %117, %118 : vector<16x1xf32>
    %cst_46 = arith.constant 9.99999974E-6 : f32
    %120 = vector.broadcast %cst_46 : f32 to vector<16x1xf32>
    %121 = arith.addf %119, %120 : vector<16x1xf32>
    %122 = math.rsqrt %121 : vector<16x1xf32>
    %123 = vector.broadcast %112 : vector<16x1xf32> to vector<16x256xf32>
    %124 = arith.subf %108, %123 : vector<16x256xf32>
    %125 = vector.broadcast %122 : vector<16x1xf32> to vector<16x256xf32>
    %126 = arith.mulf %124, %125 : vector<16x256xf32>
    %127 = vector.broadcast %3 : vector<1x256xf32> to vector<16x256xf32>
    %128 = arith.mulf %126, %127 : vector<16x256xf32>
    %129 = vector.broadcast %4 : vector<1x256xf32> to vector<16x256xf32>
    %130 = arith.addf %128, %129 : vector<16x256xf32>
    %cst_47 = arith.constant 0.000000e+00 : f32
    %131 = vector.broadcast %cst_47 : f32 to vector<16x256xf32>
    %132 = arith.maximumf %130, %131 : vector<16x256xf32>
    %133 = arith.truncf %132 : vector<16x256xf32> to vector<16x256xbf16>
    %c0_48 = arith.constant 0 : index
    %c0_49 = arith.constant 0 : index
    %134 = vector.load %arg5[%c0_48, %c0_49] : memref<256x128xbf16, #tpu.memory_space<vmem>>, vector<256x128xbf16>
    %cst_50 = arith.constant dense<0.000000e+00> : vector<16x128xf32>
    %135 = tpu.matmul %133, %134, %cst_50 {dimension_numbers = #tpu.dot_dimension_numbers<[1], [0], [0], [1], [0, 0, 1, 1], [], []>} : vector<16x256xbf16>, vector<256x128xbf16>, vector<16x128xf32> -> vector<16x128xf32>
    %136 = vector.broadcast %5 : vector<1x128xf32> to vector<16x128xf32>
    %137 = arith.addf %135, %136 : vector<16x128xf32>
    %cst_51 = arith.constant dense<0.000000e+00> : vector<16xf32>
    %138 = vector.multi_reduction <add>, %137, %cst_51 [1] : vector<16x128xf32> to vector<16xf32>
    %139 = vector.shape_cast %138 : vector<16xf32> to vector<16x1xf32>
    %cst_52 = arith.constant 1.280000e+02 : f32
    %140 = vector.broadcast %cst_52 : f32 to vector<16x1xf32>
    %141 = arith.divf %139, %140 : vector<16x1xf32>
    %142 = vector.broadcast %141 : vector<16x1xf32> to vector<16x128xf32>
    %143 = arith.subf %137, %142 : vector<16x128xf32>
    %144 = arith.mulf %143, %143 : vector<16x128xf32>
    %cst_53 = arith.constant dense<0.000000e+00> : vector<16xf32>
    %145 = vector.multi_reduction <add>, %144, %cst_53 [1] : vector<16x128xf32> to vector<16xf32>
    %146 = vector.shape_cast %145 : vector<16xf32> to vector<16x1xf32>
    %cst_54 = arith.constant 1.280000e+02 : f32
    %147 = vector.broadcast %cst_54 : f32 to vector<16x1xf32>
    %148 = arith.divf %146, %147 : vector<16x1xf32>
    %cst_55 = arith.constant 9.99999974E-6 : f32
    %149 = vector.broadcast %cst_55 : f32 to vector<16x1xf32>
    %150 = arith.addf %148, %149 : vector<16x1xf32>
    %151 = math.rsqrt %150 : vector<16x1xf32>
    %152 = vector.broadcast %141 : vector<16x1xf32> to vector<16x128xf32>
    %153 = arith.subf %137, %152 : vector<16x128xf32>
    %154 = vector.broadcast %151 : vector<16x1xf32> to vector<16x128xf32>
    %155 = arith.mulf %153, %154 : vector<16x128xf32>
    %156 = vector.broadcast %6 : vector<1x128xf32> to vector<16x128xf32>
    %157 = arith.mulf %155, %156 : vector<16x128xf32>
    %158 = vector.broadcast %7 : vector<1x128xf32> to vector<16x128xf32>
    %159 = arith.addf %157, %158 : vector<16x128xf32>
    %cst_56 = arith.constant 0.000000e+00 : f32
    %160 = vector.broadcast %cst_56 : f32 to vector<16x128xf32>
    %161 = arith.maximumf %159, %160 : vector<16x128xf32>
    %162 = arith.truncf %161 : vector<16x128xf32> to vector<16x128xbf16>
    %c0_57 = arith.constant 0 : index
    %c0_58 = arith.constant 0 : index
    %163 = vector.load %arg6[%c0_57, %c0_58] : memref<128x64xbf16, #tpu.memory_space<vmem>>, vector<128x64xbf16>
    %cst_59 = arith.constant dense<0.000000e+00> : vector<16x64xf32>
    %164 = tpu.matmul %162, %163, %cst_59 {dimension_numbers = #tpu.dot_dimension_numbers<[1], [0], [0], [1], [0, 0, 1, 1], [], []>} : vector<16x128xbf16>, vector<128x64xbf16>, vector<16x64xf32> -> vector<16x64xf32>
    %165 = vector.broadcast %8 : vector<1x64xf32> to vector<16x64xf32>
    %166 = arith.addf %164, %165 : vector<16x64xf32>
    %cst_60 = arith.constant dense<0.000000e+00> : vector<16xf32>
    %167 = vector.multi_reduction <add>, %166, %cst_60 [1] : vector<16x64xf32> to vector<16xf32>
    %168 = vector.shape_cast %167 : vector<16xf32> to vector<16x1xf32>
    %cst_61 = arith.constant 6.400000e+01 : f32
    %169 = vector.broadcast %cst_61 : f32 to vector<16x1xf32>
    %170 = arith.divf %168, %169 : vector<16x1xf32>
    %171 = vector.broadcast %170 : vector<16x1xf32> to vector<16x64xf32>
    %172 = arith.subf %166, %171 : vector<16x64xf32>
    %173 = arith.mulf %172, %172 : vector<16x64xf32>
    %cst_62 = arith.constant dense<0.000000e+00> : vector<16xf32>
    %174 = vector.multi_reduction <add>, %173, %cst_62 [1] : vector<16x64xf32> to vector<16xf32>
    %175 = vector.shape_cast %174 : vector<16xf32> to vector<16x1xf32>
    %cst_63 = arith.constant 6.400000e+01 : f32
    %176 = vector.broadcast %cst_63 : f32 to vector<16x1xf32>
    %177 = arith.divf %175, %176 : vector<16x1xf32>
    %cst_64 = arith.constant 9.99999974E-6 : f32
    %178 = vector.broadcast %cst_64 : f32 to vector<16x1xf32>
    %179 = arith.addf %177, %178 : vector<16x1xf32>
    %180 = math.rsqrt %179 : vector<16x1xf32>
    %181 = vector.broadcast %170 : vector<16x1xf32> to vector<16x64xf32>
    %182 = arith.subf %166, %181 : vector<16x64xf32>
    %183 = vector.broadcast %180 : vector<16x1xf32> to vector<16x64xf32>
    %184 = arith.mulf %182, %183 : vector<16x64xf32>
    %185 = vector.broadcast %9 : vector<1x64xf32> to vector<16x64xf32>
    %186 = arith.mulf %184, %185 : vector<16x64xf32>
    %187 = vector.broadcast %10 : vector<1x64xf32> to vector<16x64xf32>
    %188 = arith.addf %186, %187 : vector<16x64xf32>
    %cst_65 = arith.constant 0.000000e+00 : f32
    %189 = vector.broadcast %cst_65 : f32 to vector<16x64xf32>
    %190 = arith.maximumf %188, %189 : vector<16x64xf32>
    %191 = vector.broadcast %11 : vector<1x64xf32> to vector<16x64xf32>
    %192 = arith.mulf %190, %191 : vector<16x64xf32>
    %cst_66 = arith.constant dense<0.000000e+00> : vector<16xf32>
    %193 = vector.multi_reduction <add>, %192, %cst_66 [1] : vector<16x64xf32> to vector<16xf32>
    %194 = vector.shape_cast %193 : vector<16xf32> to vector<16x1xf32>
    %195 = vector.broadcast %12 : vector<1x1xf32> to vector<16x1xf32>
    %196 = arith.addf %194, %195 : vector<16x1xf32>
    %cst_67 = arith.constant 0.000000e+00 : f32
    %197 = vector.broadcast %cst_67 : f32 to vector<16x1xf32>
    %198 = arith.maximumf %196, %197 : vector<16x1xf32>
    %c0_68 = arith.constant 0 : index
    %c0_69 = arith.constant 0 : index
    %199 = vector.load %arg9[%c0_68, %c0_69] : memref<16x1xf32, #tpu.memory_space<vmem>>, vector<16x1xf32>
    tpu.vector_store %arg9[%c0_68, %c0_69], %198 {strides = array<i32>} : memref<16x1xf32, #tpu.memory_space<vmem>>, vector<16x1xf32>,
    return
  }
  func.func @transform_0(%arg0: i32) -> (i32, i32) {
    %c0_i32 = arith.constant 0 : i32
    %c0_i32_0 = arith.constant 0 : i32
    return %arg0, %c0_i32 : i32, i32
  }
  func.func @transform_1(%arg0: i32) -> (i32, i32) {
    %c0_i32 = arith.constant 0 : i32
    %c0_i32_0 = arith.constant 0 : i32
    return %arg0, %c0_i32 : i32, i32
  }
  func.func @transform_2(%arg0: i32) -> (i32, i32) {
    %c0_i32 = arith.constant 0 : i32
    %c0_i32_0 = arith.constant 0 : i32
    %c0_i32_1 = arith.constant 0 : i32
    return %c0_i32, %c0_i32_0 : i32, i32
  }
  func.func @transform_3(%arg0: i32) -> (i32, i32) {
    %c0_i32 = arith.constant 0 : i32
    %c0_i32_0 = arith.constant 0 : i32
    %c0_i32_1 = arith.constant 0 : i32
    return %c0_i32, %c0_i32_0 : i32, i32
  }
  func.func @transform_4(%arg0: i32) -> (i32, i32) {
    %c0_i32 = arith.constant 0 : i32
    %c0_i32_0 = arith.constant 0 : i32
    %c0_i32_1 = arith.constant 0 : i32
    return %c0_i32, %c0_i32_0 : i32, i32
  }
  func.func @transform_5(%arg0: i32) -> (i32, i32) {
    %c0_i32 = arith.constant 0 : i32
    %c0_i32_0 = arith.constant 0 : i32
    %c0_i32_1 = arith.constant 0 : i32
    return %c0_i32, %c0_i32_0 : i32, i32
  }
  func.func @transform_6(%arg0: i32) -> (i32, i32) {
    %c0_i32 = arith.constant 0 : i32
    %c0_i32_0 = arith.constant 0 : i32
    %c0_i32_1 = arith.constant 0 : i32
    return %c0_i32, %c0_i32_0 : i32, i32
  }
  func.func @transform_7(%arg0: i32) -> (i32, i32) {
    %c0_i32 = arith.constant 0 : i32
    %c0_i32_0 = arith.constant 0 : i32
    %c0_i32_1 = arith.constant 0 : i32
    return %c0_i32, %c0_i32_0 : i32, i32
  }
  func.func @transform_8(%arg0: i32) -> (i32, i32) {
    %c0_i32 = arith.constant 0 : i32
    %c0_i32_0 = arith.constant 0 : i32
    return %arg0, %c0_i32 : i32, i32
  }
}

</mosaic_0001>

<llo_original>
// kernel: tpu_custom_call.1
$region0: #{tpu_custom_call.1}
  #allocation0 [shape = 'u32[]', space=smem, size = 0x4, offset = 0x4, fixed_abs, tag = 'smem constant byte address 0x4 - core index']
  #allocation1 [shape = 'u32[144,128]{1,0:T(1,128)}', space=vmem, size = 0x12000, scoped, tag = 'internal scratch']
  %s0 = inlined_call_operand.hbm [shape: f32[16,32], index: 0, kind: input, shape index: {}]
  %s1 = inlined_call_operand.vmem [shape: s32[16,4], index: 1, kind: input, shape index: {}]
  %s2 = inlined_call_operand.hbm [shape: bf16[32,256], index: 2, kind: input, shape index: {}]
  %s3 = inlined_call_operand.hbm [shape: bf16[128,256], index: 3, kind: input, shape index: {}]
  %s4 = inlined_call_operand.vmem [shape: bf16[256,128], index: 4, kind: input, shape index: {}]
  %s5 = inlined_call_operand.vmem [shape: bf16[128,64], index: 5, kind: input, shape index: {}]
  %s6 = inlined_call_operand.hbm [shape: bf16[48,128], index: 6, kind: input, shape index: {}]
  %s7 = inlined_call_operand.hbm [shape: f32[13,256], index: 7, kind: input, shape index: {}]
  %s8 = inlined_call_operand.vmem [shape: f32[16,1], index: 8, kind: output, shape index: {}]
  %s9 = sld [smem:[#allocation0]]
  $region62: #{tpu_custom_call.1} parent=0
    _
  %s11 = ssub.s32 1, %s9
  %s12 = scalar_select 0, %s11, %s9
  $region1: #{tpu_custom_call.1} parent=0
    #allocation2 [shape = 'u8[8192]{0}', space=vmem, size = 0x2000, scoped, tag = 'input window, operand 0, single buffered']
    #allocation3 [shape = 's32[1]{0}', space=sflag, size = 0x4, scoped, tag = 'scoped memory for tpu_custom_call.1']
    #allocation4 [shape = 'u8[16384]{0}', space=vmem, size = 0x4000, scoped, tag = 'input window, operand 2, single buffered']
    #allocation5 [shape = 's32[1]{0}', space=sflag, size = 0x4, scoped, tag = 'scoped memory for tpu_custom_call.1']
    #allocation6 [shape = 'u8[65536]{0}', space=vmem, size = 0x10000, scoped, tag = 'input window, operand 3, single buffered']
    #allocation7 [shape = 'u8[12288]{0}', space=vmem, size = 0x3000, scoped, tag = 'input window, operand 6, single buffered']
    #allocation8 [shape = 's32[1]{0}', space=sflag, size = 0x4, scoped, tag = 'scoped memory for tpu_custom_call.1']
    #allocation9 [shape = 'u8[16384]{0}', space=vmem, size = 0x4000, scoped, tag = 'input window, operand 7, single buffered']
    %13 = vsyncpa [#allocation3], 0
    %14 = vsyncpa [#allocation5], 0
    %15 = vsyncpa [#allocation8], 0
    // Predicated region
    $region2: #{tpu_custom_call.1} parent=1 // pred_check
      _
    $region3: #{tpu_custom_call.1} parent=1 // pred_check_branch
      %17 = sbr.rel (0) target = $region5
    $region4: #{tpu_custom_call.1} parent=1 // pred_region
      %s19 = ssub.s32 256, 256
      %20 = vsyncadd [#allocation3], %s19
      %s21 = sshll.u32 [#allocation2], 4
      %s22 = int_to_ptr.vmem [resolvable:$true] %s21
      %27 = dma.hbm_to_vmem [thread:$0]  %s0, 256, %s22, [#allocation3], 128, 128, 8
    $region5: #{tpu_custom_call.1} parent=1 // pred_fallthru
      _
    // Predicated region
    $region6: #{tpu_custom_call.1} parent=1 // pred_check
      _
    $region7: #{tpu_custom_call.1} parent=1 // pred_check_branch
      %29 = sbr.rel (0) target = $region9
    $region8: #{tpu_custom_call.1} parent=1 // pred_region
      _
    $region9: #{tpu_custom_call.1} parent=1 // pred_fallthru
      _
    // Predicated region
    $region10: #{tpu_custom_call.1} parent=1 // pred_check
      _
    $region11: #{tpu_custom_call.1} parent=1 // pred_check_branch
      %31 = sbr.rel (0) target = $region13
    $region12: #{tpu_custom_call.1} parent=1 // pred_region
      %s33 = ssub.s32 512, 512
      %34 = vsyncadd [#allocation5], %s33
      %s35 = sshll.u32 [#allocation4], 4
      %s36 = int_to_ptr.vmem [resolvable:$true] %s35
      %41 = dma.hbm_to_vmem [thread:$0]  %s2, 512, %s36, [#allocation5], 128, 128, 8
    $region13: #{tpu_custom_call.1} parent=1 // pred_fallthru
      _
    // Predicated region
    $region14: #{tpu_custom_call.1} parent=1 // pred_check
      _
    $region15: #{tpu_custom_call.1} parent=1 // pred_check_branch
      %43 = sbr.rel (0) target = $region17
    $region16: #{tpu_custom_call.1} parent=1 // pred_region
      %s45 = ssub.s32 2048, 2048
      %46 = vsyncadd [#allocation5], %s45
      %s47 = sshll.u32 [#allocation6], 4
      %s48 = int_to_ptr.vmem [resolvable:$true] %s47
      %53 = dma.hbm_to_vmem [thread:$0]  %s3, 2048, %s48, [#allocation5], 128, 128, 8
    $region17: #{tpu_custom_call.1} parent=1 // pred_fallthru
      _
    // Predicated region
    $region18: #{tpu_custom_call.1} parent=1 // pred_check
      _
    $region19: #{tpu_custom_call.1} parent=1 // pred_check_branch
      %55 = sbr.rel (0) target = $region21
    $region20: #{tpu_custom_call.1} parent=1 // pred_region
      _
    $region21: #{tpu_custom_call.1} parent=1 // pred_fallthru
      _
    // Predicated region
    $region22: #{tpu_custom_call.1} parent=1 // pred_check
      _
    $region23: #{tpu_custom_call.1} parent=1 // pred_check_branch
      %57 = sbr.rel (0) target = $region25
    $region24: #{tpu_custom_call.1} parent=1 // pred_region
      _
    $region25: #{tpu_custom_call.1} parent=1 // pred_fallthru
      _
    // Predicated region
    $region26: #{tpu_custom_call.1} parent=1 // pred_check
      _
    $region27: #{tpu_custom_call.1} parent=1 // pred_check_branch
      %59 = sbr.rel (0) target = $region29
    $region28: #{tpu_custom_call.1} parent=1 // pred_region
      %s61 = ssub.s32 384, 384
      %62 = vsyncadd [#allocation8], %s61
      %s63 = sshll.u32 [#allocation7], 4
      %s64 = int_to_ptr.vmem [resolvable:$true] %s63
      %69 = dma.hbm_to_vmem [thread:$0]  %s6, 384, %s64, [#allocation8], 64, 64, 4
    $region29: #{tpu_custom_call.1} parent=1 // pred_fallthru
      _
    // Predicated region
    $region30: #{tpu_custom_call.1} parent=1 // pred_check
      _
    $region31: #{tpu_custom_call.1} parent=1 // pred_check_branch
      %71 = sbr.rel (0) target = $region33
    $region32: #{tpu_custom_call.1} parent=1 // pred_region
      %s73 = ssub.s32 512, 512
      %74 = vsyncadd [#allocation8], %s73
      %s75 = sshll.u32 [#allocation9], 4
      %s76 = int_to_ptr.vmem [resolvable:$true] %s75
      %81 = dma.hbm_to_vmem [thread:$0]  %s7, 512, %s76, [#allocation8], 256, 256, 16
    $region33: #{tpu_custom_call.1} parent=1 // pred_fallthru
      _
    // Predicated region
    $region34: #{tpu_custom_call.1} parent=1 // pred_check
      _
    $region35: #{tpu_custom_call.1} parent=1 // pred_check_branch
      %83 = sbr.rel (0) target = $region37
    $region36: #{tpu_custom_call.1} parent=1 // pred_region
      %84 = dma.done [#allocation3], 256
    $region37: #{tpu_custom_call.1} parent=1 // pred_fallthru
      _
    // Predicated region
    $region38: #{tpu_custom_call.1} parent=1 // pred_check
      _
    $region39: #{tpu_custom_call.1} parent=1 // pred_check_branch
      %86 = sbr.rel (0) target = $region41
    $region40: #{tpu_custom_call.1} parent=1 // pred_region
      %87 = dma.done [#allocation5], 512
    $region41: #{tpu_custom_call.1} parent=1 // pred_fallthru
      _
    // Predicated region
    $region42: #{tpu_custom_call.1} parent=1 // pred_check
      _
    $region43: #{tpu_custom_call.1} parent=1 // pred_check_branch
      %89 = sbr.rel (0) target = $region45
    $region44: #{tpu_custom_call.1} parent=1 // pred_region
      %90 = dma.done [#allocation5], 2048
    $region45: #{tpu_custom_call.1} parent=1 // pred_fallthru
      _
    // Predicated region
    $region46: #{tpu_custom_call.1} parent=1 // pred_check
      _
    $region47: #{tpu_custom_call.1} parent=1 // pred_check_branch
      %92 = sbr.rel (0) target = $region49
    $region48: #{tpu_custom_call.1} parent=1 // pred_region
      %93 = dma.done [#allocation8], 384
    $region49: #{tpu_custom_call.1} parent=1 // pred_fallthru
      _
    // Predicated region
    $region50: #{tpu_custom_call.1} parent=1 // pred_check
      _
    $region51: #{tpu_custom_call.1} parent=1 // pred_check_branch
      %95 = sbr.rel (0) target = $region53
    $region52: #{tpu_custom_call.1} parent=1 // pred_region
      %96 = dma.done [#allocation8], 512
    $region53: #{tpu_custom_call.1} parent=1 // pred_fallthru
      _
    %v98 = vld [vmem:[#allocation9] ss:$0 sm:$0xff]
    %v99 = vld [vmem:[#allocation9 + $0x1] ss:$0 sm:$0xff]
    %s100 = scalar_lea.vmem [#allocation9], 2
    %v101 = vld [vmem:[%s100] ss:$8 sm:$0x3]
    %s102 = scalar_lea.vmem [#allocation9], 3
    %v103 = vld [vmem:[%s102] ss:$8 sm:$0x3]
    %s104 = scalar_lea.vmem [#allocation9], 4
    %v105 = vld [vmem:[%s104] ss:$8 sm:$0x3]
    %v106 = vld [vmem:[#allocation9 + $0x5] ss:$0 sm:$0xff]
    %v107 = vld [vmem:[#allocation9 + $0x6] ss:$0 sm:$0xff]
    %v108 = vld [vmem:[#allocation9 + $0x7] ss:$0 sm:$0xff]
    %v109 = vld [vmem:[#allocation9 + $0x10] ss:$0 sm:$0xff]
    %v110 = vld [vmem:[#allocation9 + $0x11] ss:$0 sm:$0xff]
    %v111 = vld [vmem:[#allocation9 + $0x12] ss:$0 sm:$0xff]
    %v112 = vld [vmem:[#allocation9 + $0x13] ss:$0 sm:$0xff]
    %v113 = vld [vmem:[#allocation9 + $0x14] ss:$0 sm:$0xff]
    %v114 = vld [vmem:[#allocation2] sm:$0xff]
    %v115 = vld [vmem:[#allocation2 + $0x8] sm:$0xff]
    %vm116 = vcmp.ne.f32.partialorder %v114, %v114
    %vm117 = vcmp.ne.f32.partialorder %v115, %v115
    %v118 = vsel %vm116, 0.0, %v114
    %v119 = vsel %vm117, 0.0, %v115
    %vm120 = vcmp.eq.f32.partialorder %v118, inf
    %vm121 = vcmp.eq.f32.partialorder %v119, inf
    %v122 = vsel %vm120, 3.4028235e+38, %v118
    %v123 = vsel %vm121, 3.4028235e+38, %v119
    %vm124 = vcmp.eq.f32.partialorder %v122, -inf
    %vm125 = vcmp.eq.f32.partialorder %v123, -inf
    %v126 = vsel %vm124, -3.4028235e+38, %v122
    %v127 = vsel %vm125, -3.4028235e+38, %v123
    %v128 = vld [vmem:[%s1] sm:$0xff]
    %v129 = vld [vmem:[%s1 + $0x8] sm:$0xff]
    %v130 = vlaneseq
    %v131 = vand.u32 %v130, 127
    %132 = vset.pattern.permute.xlu0 0
    %133 = vperm.xlu0 %132, %v128
    %v134 = vpop.permute.xlu0 %133
    %135 = vset.pattern.permute.xlu0 0
    %136 = vperm.xlu0 %135, %v129
    %v137 = vpop.permute.xlu0 %136
    %vm138 = vcmp.eq.s32.totalorder %v131, %v134
    %vm139 = vcmp.eq.s32.totalorder %v131, %v137
    %140 = vset.pattern.permute.xlu0 1
    %141 = vperm.xlu0 %140, %v128
    %v142 = vpop.permute.xlu0 %141
    %143 = vset.pattern.permute.xlu0 1
    %144 = vperm.xlu0 %143, %v129
    %v145 = vpop.permute.xlu0 %144
    %vm146 = vcmp.eq.s32.totalorder %v131, %v142
    %vm147 = vcmp.eq.s32.totalorder %v131, %v145
    %vm148 = vmor %vm138, %vm146
    %vm149 = vmor %vm139, %vm147
    %150 = vset.pattern.permute.xlu0 2
    %151 = vperm.xlu0 %150, %v128
    %v152 = vpop.permute.xlu0 %151
    %153 = vset.pattern.permute.xlu0 2
    %154 = vperm.xlu0 %153, %v129
    %v155 = vpop.permute.xlu0 %154
    %vm156 = vcmp.eq.s32.totalorder %v131, %v152
    %vm157 = vcmp.eq.s32.totalorder %v131, %v155
    %vm158 = vmor %vm148, %vm156
    %vm159 = vmor %vm149, %vm157
    %160 = vset.pattern.permute.xlu0 3
    %161 = vperm.xlu0 %160, %v128
    %v162 = vpop.permute.xlu0 %161
    %163 = vset.pattern.permute.xlu0 3
    %164 = vperm.xlu0 %163, %v129
    %v165 = vpop.permute.xlu0 %164
    %vm166 = vcmp.eq.s32.totalorder %v131, %v162
    %vm167 = vcmp.eq.s32.totalorder %v131, %v165
    %vm168 = vmor %vm158, %vm166
    %vm169 = vmor %vm159, %vm167
    %v170 = vsel %vm168, 1, 0
    %v171 = vsel %vm169, 1, 0
    %v172 = vcvt.s32.f32 %v170
    %v173 = vcvt.s32.f32 %v171
    %v174 = vpack.c.bf16 %v173, %v172
    %v175 = vld [vmem:[#allocation7] sm:$0xf]
    %v176 = vld [vmem:[#allocation7 + $0x4] sm:$0xf]
    %v177 = vld [vmem:[#allocation7 + $0x8] sm:$0xf]
    %v178 = vld [vmem:[#allocation7 + $0xc] sm:$0xf]
    %v179 = vld [vmem:[#allocation7 + $0x10] sm:$0xf]
    %v180 = vld [vmem:[#allocation7 + $0x14] sm:$0xf]
    %v187 = vunpack.c.l.b16 %v175
    %v188 = vunpack.c.l.b16 %v176
    %v189 = vunpack.c.l.b16 %v177
    %v190 = vunpack.c.l.b16 %v178
    %v191 = vunpack.c.l.b16 %v179
    %v192 = vunpack.c.l.b16 %v180
    %v193 = vpack.c.b16 %v188, %v187
    %v194 = vpack.c.b16 %v190, %v189
    %v195 = vpack.c.b16 %v192, %v191
    %vm199 = vcmask 392192
    %v201 = vsel %vm199, %v174, 0
    %203 = vmatprep.subr.bf16.mxu0 0
    %204 = vmatpush1.bf16.msra.mxu0 %v193
    %205 = vmatprep.subr.bf16.mxu0 0
    %206 = vmatpush1.bf16.msra.mxu0 %v194
    %207 = vmatprep.subr.bf16.mxu0 0
    %208 = vmatpush1.bf16.msra.mxu0 %v195
    %209 = vmatprep.subr.bf16.mxu0 0
    %210 = vmatpush1.bf16.msra.mxu0 0
    %211 = vmatprep.subr.bf16.mxu0 0
    %212 = vmatpush1.bf16.msra.mxu0 0
    %213 = vmatprep.subr.bf16.mxu0 0
    %214 = vmatpush1.bf16.msra.mxu0 0
    %215 = vmatprep.subr.bf16.mxu0 0
    %216 = vmatpush1.bf16.msra.mxu0 0
    %217 = vmatprep.subr.bf16.mxu0 0
    %218 = vmatpush1.bf16.msra.mxu0 0
    %219 = vmatprep.subr.bf16.mxu0 0
    %220 = vmatpush1.bf16.msra.mxu0 0
    %221 = vmatprep.subr.bf16.mxu0 0
    %222 = vmatpush1.bf16.msra.mxu0 0
    %223 = vmatprep.subr.bf16.mxu0 0
    %224 = vmatpush1.bf16.msra.mxu0 0
    %225 = vmatprep.subr.bf16.mxu0 0
    %226 = vmatpush1.bf16.msra.mxu0 0
    %227 = vmatprep.subr.bf16.mxu0 0
    %228 = vmatpush1.bf16.msra.mxu0 0
    %229 = vmatprep.subr.bf16.mxu0 0
    %230 = vmatpush1.bf16.msra.mxu0 0
    %231 = vmatprep.subr.bf16.mxu0 0
    %232 = vmatpush1.bf16.msra.mxu0 0
    %233 = vmatprep.subr.bf16.mxu0 0
    %234 = vmatpush1.bf16.msra.mxu0 0
    %235 = vmatprep.mubr.bf16.mxu0 0
    %236 = vmatmul.mubr.bf16.gmra.mrb[0].mxu0 %v201
    %v237 = vpop.f32.mrb[0].mxu0
    %v238 = vadd.f32 0.0, %v237
    %v239 = vpop.f32.mrb[0].mxu0
    %v240 = vpop.f32.mrb[0].mxu0
    %v241 = vadd.f32 0.0, %v240
    %v242 = vpop.f32.mrb[0].mxu0
    %243 = vdwg.mxu0
    %vm244 = vcmask 261120
    %v245 = vsel %vm244, %v126, 0.0
    %246 = vadd.xlane.f32.xlu0 %v245
    %v247 = vpop.xlane.xlu0 %246
    %v248 = vsel %vm244, %v127, 0.0
    %249 = vadd.xlane.f32.xlu0 %v248
    %v250 = vpop.xlane.xlu0 %249
    %v251 = vrcp.pop 32.0
    %v252 = vmul.f32 %v247, %v251
    %v253 = vmul.f32 %v250, %v251
    %v254 = vsub.f32 %v126, %v252
    %v255 = vsub.f32 %v127, %v253
    %v256 = vmul.f32 %v254, %v254
    %v257 = vmul.f32 %v255, %v255
    %v258 = vsel %vm244, %v256, 0.0
    %259 = vadd.xlane.f32.xlu0 %v258
    %v260 = vpop.xlane.xlu0 %259
    %v261 = vsel %vm244, %v257, 0.0
    %262 = vadd.xlane.f32.xlu0 %v261
    %v263 = vpop.xlane.xlu0 %262
    %v264 = vmul.f32 %v260, %v251
    %v265 = vmul.f32 %v263, %v251
    %v266 = vadd.f32 %v264, 1e-05
    %v267 = vadd.f32 %v265, 1e-05
    %v268 = vrsqrt.pop %v266
    %v269 = vrsqrt.pop %v267
    %v270 = vmul.f32 %v254, %v268
    %v271 = vmul.f32 %v255, %v269
    %v272 = vmul.f32 %v270, %v98
    %v273 = vmul.f32 %v271, %v98
    %v274 = vadd.f32 %v272, %v99
    %v275 = vadd.f32 %v273, %v99
    %v276 = vsel %vm244, %v274, 0.0
    %277 = vadd.xlane.f32.xlu0 %v276
    %v278 = vpop.xlane.xlu0 %277
    %v279 = vsel %vm244, %v275, 0.0
    %280 = vadd.xlane.f32.xlu0 %v279
    %v281 = vpop.xlane.xlu0 %280
    %282 = vadd.xlane.f32.xlu0 %v238
    %v283 = vpop.xlane.xlu0 %282
    %284 = vadd.xlane.f32.xlu0 %v241
    %v285 = vpop.xlane.xlu0 %284
    %v286 = vadd.f32 %v278, %v283
    %v287 = vadd.f32 %v281, %v285
    %v288 = vmul.f32 %v286, 0.00625
    %v289 = vmul.f32 %v287, 0.00625
    %v290 = vsub.f32 %v274, %v288
    %v291 = vsub.f32 %v275, %v289
    %v292 = vmul.f32 %v290, %v290
    %v293 = vmul.f32 %v291, %v291
    %v294 = vsel %vm244, %v292, 0.0
    %295 = vadd.xlane.f32.xlu0 %v294
    %v296 = vpop.xlane.xlu0 %295
    %v297 = vsel %vm244, %v293, 0.0
    %298 = vadd.xlane.f32.xlu0 %v297
    %v299 = vpop.xlane.xlu0 %298
    %v300 = vsub.f32 %v238, %v288
    %v301 = vsub.f32 %v241, %v289
    %v302 = vmul.f32 %v300, %v300
    %v303 = vmul.f32 %v301, %v301
    %304 = vadd.xlane.f32.xlu0 %v302
    %v305 = vpop.xlane.xlu0 %304
    %306 = vadd.xlane.f32.xlu0 %v303
    %v307 = vpop.xlane.xlu0 %306
    %v308 = vadd.f32 %v296, %v305
    %v309 = vadd.f32 %v299, %v307
    %v310 = vmul.f32 %v308, 0.00625
    %v311 = vmul.f32 %v309, 0.00625
    %v312 = vadd.f32 %v310, 1e-05
    %v313 = vadd.f32 %v311, 1e-05
    %v314 = vrsqrt.pop %v312
    %v315 = vrsqrt.pop %v313
    %v316 = vmul.f32 %v290, %v314
    %v317 = vmul.f32 %v291, %v315
    %v318 = vpack.c.bf16 %v317, %v316
    %v319 = vmul.f32 %v300, %v314
    %v320 = vmul.f32 %v301, %v315
    %v321 = vpack.c.bf16 %v320, %v319
    %v322 = vld [vmem:[#allocation4] sm:$0xff]
    %v323 = vld [vmem:[#allocation4 + $0x8] sm:$0xff]
    %v324 = vld [vmem:[#allocation4 + $0x10] sm:$0xff]
    %v325 = vld [vmem:[#allocation4 + $0x18] sm:$0xff]
    %v326 = vld [vmem:[#allocation6] sm:$0xff]
    %v327 = vld [vmem:[#allocation6 + $0x8] sm:$0xff]
    %v328 = vld [vmem:[#allocation6 + $0x10] sm:$0xff]
    %v329 = vld [vmem:[#allocation6 + $0x18] sm:$0xff]
    %v330 = vld [vmem:[#allocation6 + $0x20] sm:$0xff]
    %v331 = vld [vmem:[#allocation6 + $0x28] sm:$0xff]
    %v332 = vld [vmem:[#allocation6 + $0x30] sm:$0xff]
    %v333 = vld [vmem:[#allocation6 + $0x38] sm:$0xff]
    %v334 = vld [vmem:[#allocation6 + $0x40] sm:$0xff]
    %v335 = vld [vmem:[#allocation6 + $0x48] sm:$0xff]
    %v336 = vld [vmem:[#allocation6 + $0x50] sm:$0xff]
    %v337 = vld [vmem:[#allocation6 + $0x58] sm:$0xff]
    %v338 = vld [vmem:[#allocation6 + $0x60] sm:$0xff]
    %v339 = vld [vmem:[#allocation6 + $0x68] sm:$0xff]
    %v340 = vld [vmem:[#allocation6 + $0x70] sm:$0xff]
    %v341 = vld [vmem:[#allocation6 + $0x78] sm:$0xff]
    %v358 = vunpack.c.l.b16 %v326
    %v359 = vunpack.c.h.b16 %v326
    %v360 = vunpack.c.l.b16 %v327
    %v361 = vunpack.c.h.b16 %v327
    %v362 = vunpack.c.l.b16 %v328
    %v363 = vunpack.c.h.b16 %v328
    %v364 = vunpack.c.l.b16 %v329
    %v365 = vunpack.c.h.b16 %v329
    %v366 = vunpack.c.l.b16 %v330
    %v367 = vunpack.c.h.b16 %v330
    %v368 = vunpack.c.l.b16 %v331
    %v369 = vunpack.c.h.b16 %v331
    %v370 = vunpack.c.l.b16 %v332
    %v371 = vunpack.c.h.b16 %v332
    %v372 = vunpack.c.l.b16 %v333
    %v373 = vunpack.c.h.b16 %v333
    %v374 = vunpack.c.l.b16 %v334
    %v375 = vunpack.c.h.b16 %v334
    %v376 = vunpack.c.l.b16 %v335
    %v377 = vunpack.c.h.b16 %v335
    %v378 = vunpack.c.l.b16 %v336
    %v379 = vunpack.c.h.b16 %v336
    %v380 = vunpack.c.l.b16 %v337
    %v381 = vunpack.c.h.b16 %v337
    %v382 = vunpack.c.l.b16 %v338
    %v383 = vunpack.c.h.b16 %v338
    %v384 = vunpack.c.l.b16 %v339
    %v385 = vunpack.c.h.b16 %v339
    %v386 = vunpack.c.l.b16 %v340
    %v387 = vunpack.c.h.b16 %v340
    %v388 = vunpack.c.l.b16 %v341
    %v389 = vunpack.c.h.b16 %v341
    %v390 = vpack.c.b16 %v360, %v358
    %v391 = vpack.c.b16 %v361, %v359
    %v392 = vpack.c.b16 %v364, %v362
    %v393 = vpack.c.b16 %v365, %v363
    %v394 = vpack.c.b16 %v368, %v366
    %v395 = vpack.c.b16 %v369, %v367
    %v396 = vpack.c.b16 %v372, %v370
    %v397 = vpack.c.b16 %v373, %v371
    %v398 = vpack.c.b16 %v376, %v374
    %v399 = vpack.c.b16 %v377, %v375
    %v400 = vpack.c.b16 %v380, %v378
    %v401 = vpack.c.b16 %v381, %v379
    %v402 = vpack.c.b16 %v384, %v382
    %v403 = vpack.c.b16 %v385, %v383
    %v404 = vpack.c.b16 %v388, %v386
    %v405 = vpack.c.b16 %v389, %v387
    %422 = vmatprep.subr.bf16.mxu0 %v391
    %423 = vmatpush1.bf16.msra.mxu0 %v390
    %424 = vmatprep.subr.bf16.mxu0 %v393
    %425 = vmatpush1.bf16.msra.mxu0 %v392
    %426 = vmatprep.subr.bf16.mxu0 %v395
    %427 = vmatpush1.bf16.msra.mxu0 %v394
    %428 = vmatprep.subr.bf16.mxu0 %v397
    %429 = vmatpush1.bf16.msra.mxu0 %v396
    %430 = vmatprep.subr.bf16.mxu0 %v399
    %431 = vmatpush1.bf16.msra.mxu0 %v398
    %432 = vmatprep.subr.bf16.mxu0 %v401
    %433 = vmatpush1.bf16.msra.mxu0 %v400
    %434 = vmatprep.subr.bf16.mxu0 %v403
    %435 = vmatpush1.bf16.msra.mxu0 %v402
    %436 = vmatprep.subr.bf16.mxu0 %v405
    %437 = vmatpush1.bf16.msra.mxu0 %v404
    %438 = vmatprep.subr.bf16.mxu0 0
    %439 = vmatpush1.bf16.msra.mxu0 0
    %440 = vmatprep.subr.bf16.mxu0 0
    %441 = vmatpush1.bf16.msra.mxu0 0
    %442 = vmatprep.subr.bf16.mxu0 0
    %443 = vmatpush1.bf16.msra.mxu0 0
    %444 = vmatprep.subr.bf16.mxu0 0
    %445 = vmatpush1.bf16.msra.mxu0 0
    %446 = vmatprep.subr.bf16.mxu0 0
    %447 = vmatpush1.bf16.msra.mxu0 0
    %448 = vmatprep.subr.bf16.mxu0 0
    %449 = vmatpush1.bf16.msra.mxu0 0
    %450 = vmatprep.subr.bf16.mxu0 0
    %451 = vmatpush1.bf16.msra.mxu0 0
    %452 = vmatprep.subr.bf16.mxu0 0
    %453 = vmatpush1.bf16.msra.mxu0 0
    %454 = vmatprep.mubr.bf16.mxu0 0
    %455 = vmatmul.mubr.bf16.gmra.mrb[0].mxu0 %v321
    %v456 = vpop.f32.mrb[0].mxu0
    %v457 = vadd.f32 0.0, %v456
    %v458 = vpop.f32.mrb[0].mxu0
    %v459 = vadd.f32 0.0, %v458
    %v460 = vpop.f32.mrb[0].mxu0
    %v461 = vadd.f32 0.0, %v460
    %v462 = vpop.f32.mrb[0].mxu0
    %v463 = vadd.f32 0.0, %v462
    %464 = vdwg.mxu0
    %v469 = vunpack.c.l.b16 %v322
    %v470 = vunpack.c.h.b16 %v322
    %v471 = vunpack.c.l.b16 %v323
    %v472 = vunpack.c.h.b16 %v323
    %v473 = vunpack.c.l.b16 %v324
    %v474 = vunpack.c.h.b16 %v324
    %v475 = vunpack.c.l.b16 %v325
    %v476 = vunpack.c.h.b16 %v325
    %v477 = vpack.c.b16 %v471, %v469
    %v478 = vpack.c.b16 %v472, %v470
    %v479 = vpack.c.b16 %v475, %v473
    %v480 = vpack.c.b16 %v476, %v474
    %v486 = vsel %vm244, %v318, 0
    %488 = vmatprep.subr.bf16.mxu0 %v478
    %489 = vmatpush1.bf16.msra.mxu0 %v477
    %490 = vmatprep.subr.bf16.mxu0 %v480
    %491 = vmatpush1.bf16.msra.mxu0 %v479
    %492 = vmatprep.subr.bf16.mxu0 0
    %493 = vmatpush1.bf16.msra.mxu0 0
    %494 = vmatprep.subr.bf16.mxu0 0
    %495 = vmatpush1.bf16.msra.mxu0 0
    %496 = vmatprep.subr.bf16.mxu0 0
    %497 = vmatpush1.bf16.msra.mxu0 0
    %498 = vmatprep.subr.bf16.mxu0 0
    %499 = vmatpush1.bf16.msra.mxu0 0
    %500 = vmatprep.subr.bf16.mxu0 0
    %501 = vmatpush1.bf16.msra.mxu0 0
    %502 = vmatprep.subr.bf16.mxu0 0
    %503 = vmatpush1.bf16.msra.mxu0 0
    %504 = vmatprep.subr.bf16.mxu0 0
    %505 = vmatpush1.bf16.msra.mxu0 0
    %506 = vmatprep.subr.bf16.mxu0 0
    %507 = vmatpush1.bf16.msra.mxu0 0
    %508 = vmatprep.subr.bf16.mxu0 0
    %509 = vmatpush1.bf16.msra.mxu0 0
    %510 = vmatprep.subr.bf16.mxu0 0
    %511 = vmatpush1.bf16.msra.mxu0 0
    %512 = vmatprep.subr.bf16.mxu0 0
    %513 = vmatpush1.bf16.msra.mxu0 0
    %514 = vmatprep.subr.bf16.mxu0 0
    %515 = vmatpush1.bf16.msra.mxu0 0
    %516 = vmatprep.subr.bf16.mxu0 0
    %517 = vmatpush1.bf16.msra.mxu0 0
    %518 = vmatprep.subr.bf16.mxu0 0
    %519 = vmatpush1.bf16.msra.mxu0 0
    %520 = vmatprep.mubr.bf16.mxu0 0
    %521 = vmatmul.mubr.bf16.gmra.mrb[0].mxu0 %v486
    %v522 = vpop.f32.mrb[0].mxu0
    %v523 = vadd.f32 %v457, %v522
    %v524 = vpop.f32.mrb[0].mxu0
    %v525 = vadd.f32 %v459, %v524
    %v526 = vpop.f32.mrb[0].mxu0
    %v527 = vadd.f32 %v461, %v526
    %v528 = vpop.f32.mrb[0].mxu0
    %v529 = vadd.f32 %v463, %v528
    %530 = vdwg.mxu0
    %v532 = vlaneseq
    %v533 = vshrl.u32 %v532, 7
    %v534 = vsub.s32 0, %v533
    %v535 = vrot.slane %v101, %v534
    %v536 = vlaneseq
    %v537 = vshrl.u32 %v536, 7
    %v538 = vsub.s32 1, %v537
    %v539 = vrot.slane %v101, %v538
    %v542 = vadd.f32 %v523, %v535
    %v543 = vadd.f32 %v525, %v539
    %v544 = vadd.f32 %v527, %v535
    %v545 = vadd.f32 %v529, %v539
    %v546 = vadd.f32 %v542, %v543
    %547 = vadd.xlane.f32.xlu0 %v546
    %v548 = vpop.xlane.xlu0 %547
    %v549 = vadd.f32 %v544, %v545
    %550 = vadd.xlane.f32.xlu0 %v549
    %v551 = vpop.xlane.xlu0 %550
    %v552 = vrcp.pop 256.0
    %v553 = vmul.f32 %v548, %v552
    %v554 = vmul.f32 %v551, %v552
    %v555 = vsub.f32 %v542, %v553
    %v556 = vsub.f32 %v543, %v553
    %v557 = vsub.f32 %v544, %v554
    %v558 = vsub.f32 %v545, %v554
    %v559 = vmul.f32 %v555, %v555
    %v560 = vmul.f32 %v556, %v556
    %v561 = vmul.f32 %v557, %v557
    %v562 = vmul.f32 %v558, %v558
    %v563 = vadd.f32 %v559, %v560
    %564 = vadd.xlane.f32.xlu0 %v563
    %v565 = vpop.xlane.xlu0 %564
    %v566 = vadd.f32 %v561, %v562
    %567 = vadd.xlane.f32.xlu0 %v566
    %v568 = vpop.xlane.xlu0 %567
    %v569 = vmul.f32 %v565, %v552
    %v570 = vmul.f32 %v568, %v552
    %v571 = vadd.f32 %v569, 1e-05
    %v572 = vadd.f32 %v570, 1e-05
    %v573 = vrsqrt.pop %v571
    %v574 = vrsqrt.pop %v572
    %v575 = vmul.f32 %v555, %v573
    %v576 = vmul.f32 %v556, %v573
    %v577 = vmul.f32 %v557, %v574
    %v578 = vmul.f32 %v558, %v574
    %v580 = vlaneseq
    %v581 = vshrl.u32 %v580, 7
    %v582 = vsub.s32 0, %v581
    %v583 = vrot.slane %v103, %v582
    %v584 = vlaneseq
    %v585 = vshrl.u32 %v584, 7
    %v586 = vsub.s32 1, %v585
    %v587 = vrot.slane %v103, %v586
    %v590 = vmul.f32 %v575, %v583
    %v591 = vmul.f32 %v576, %v587
    %v592 = vmul.f32 %v577, %v583
    %v593 = vmul.f32 %v578, %v587
    %v595 = vlaneseq
    %v596 = vshrl.u32 %v595, 7
    %v597 = vsub.s32 0, %v596
    %v598 = vrot.slane %v105, %v597
    %v599 = vlaneseq
    %v600 = vshrl.u32 %v599, 7
    %v601 = vsub.s32 1, %v600
    %v602 = vrot.slane %v105, %v601
    %v605 = vadd.f32 %v590, %v598
    %v606 = vadd.f32 %v591, %v602
    %v607 = vadd.f32 %v592, %v598
    %v608 = vadd.f32 %v593, %v602
    %v609 = vmax.f32 %v605, 0.0
    %v610 = vmax.f32 %v606, 0.0
    %v611 = vmax.f32 %v607, 0.0
    %v612 = vmax.f32 %v608, 0.0
    %v613 = vpack.c.bf16 %v611, %v609
    %v614 = vpack.c.bf16 %v612, %v610
    %v615 = vld [vmem:[%s4] sm:$0xf]
    %v616 = vld [vmem:[%s4 + $0x4] sm:$0xf]
    %v617 = vld [vmem:[%s4 + $0x8] sm:$0xf]
    %v618 = vld [vmem:[%s4 + $0xc] sm:$0xf]
    %v619 = vld [vmem:[%s4 + $0x10] sm:$0xf]
    %v620 = vld [vmem:[%s4 + $0x14] sm:$0xf]
    %v621 = vld [vmem:[%s4 + $0x18] sm:$0xf]
    %v622 = vld [vmem:[%s4 + $0x1c] sm:$0xf]
    %v623 = vld [vmem:[%s4 + $0x20] sm:$0xf]
    %v624 = vld [vmem:[%s4 + $0x24] sm:$0xf]
    %v625 = vld [vmem:[%s4 + $0x28] sm:$0xf]
    %v626 = vld [vmem:[%s4 + $0x2c] sm:$0xf]
    %v627 = vld [vmem:[%s4 + $0x30] sm:$0xf]
    %v628 = vld [vmem:[%s4 + $0x34] sm:$0xf]
    %v629 = vld [vmem:[%s4 + $0x38] sm:$0xf]
    %v630 = vld [vmem:[%s4 + $0x3c] sm:$0xf]
    %v631 = vld [vmem:[%s4 + $0x40] sm:$0xf]
    %v632 = vld [vmem:[%s4 + $0x44] sm:$0xf]
    %v633 = vld [vmem:[%s4 + $0x48] sm:$0xf]
    %v634 = vld [vmem:[%s4 + $0x4c] sm:$0xf]
    %v635 = vld [vmem:[%s4 + $0x50] sm:$0xf]
    %v636 = vld [vmem:[%s4 + $0x54] sm:$0xf]
    %v637 = vld [vmem:[%s4 + $0x58] sm:$0xf]
    %v638 = vld [vmem:[%s4 + $0x5c] sm:$0xf]
    %v639 = vld [vmem:[%s4 + $0x60] sm:$0xf]
    %v640 = vld [vmem:[%s4 + $0x64] sm:$0xf]
    %v641 = vld [vmem:[%s4 + $0x68] sm:$0xf]
    %v642 = vld [vmem:[%s4 + $0x6c] sm:$0xf]
    %v643 = vld [vmem:[%s4 + $0x70] sm:$0xf]
    %v644 = vld [vmem:[%s4 + $0x74] sm:$0xf]
    %v645 = vld [vmem:[%s4 + $0x78] sm:$0xf]
    %v646 = vld [vmem:[%s4 + $0x7c] sm:$0xf]
    %v679 = vunpack.c.l.b16 %v615
    %v680 = vunpack.c.l.b16 %v616
    %v681 = vunpack.c.l.b16 %v617
    %v682 = vunpack.c.l.b16 %v618
    %v683 = vunpack.c.l.b16 %v619
    %v684 = vunpack.c.l.b16 %v620
    %v685 = vunpack.c.l.b16 %v621
    %v686 = vunpack.c.l.b16 %v622
    %v687 = vunpack.c.l.b16 %v623
    %v688 = vunpack.c.l.b16 %v624
    %v689 = vunpack.c.l.b16 %v625
    %v690 = vunpack.c.l.b16 %v626
    %v691 = vunpack.c.l.b16 %v627
    %v692 = vunpack.c.l.b16 %v628
    %v693 = vunpack.c.l.b16 %v629
    %v694 = vunpack.c.l.b16 %v630
    %v695 = vunpack.c.l.b16 %v631
    %v696 = vunpack.c.l.b16 %v632
    %v697 = vunpack.c.l.b16 %v633
    %v698 = vunpack.c.l.b16 %v634
    %v699 = vunpack.c.l.b16 %v635
    %v700 = vunpack.c.l.b16 %v636
    %v701 = vunpack.c.l.b16 %v637
    %v702 = vunpack.c.l.b16 %v638
    %v703 = vunpack.c.l.b16 %v639
    %v704 = vunpack.c.l.b16 %v640
    %v705 = vunpack.c.l.b16 %v641
    %v706 = vunpack.c.l.b16 %v642
    %v707 = vunpack.c.l.b16 %v643
    %v708 = vunpack.c.l.b16 %v644
    %v709 = vunpack.c.l.b16 %v645
    %v710 = vunpack.c.l.b16 %v646
    %v711 = vpack.c.b16 %v680, %v679
    %v712 = vpack.c.b16 %v682, %v681
    %v713 = vpack.c.b16 %v684, %v683
    %v714 = vpack.c.b16 %v686, %v685
    %v715 = vpack.c.b16 %v688, %v687
    %v716 = vpack.c.b16 %v690, %v689
    %v717 = vpack.c.b16 %v692, %v691
    %v718 = vpack.c.b16 %v694, %v693
    %v719 = vpack.c.b16 %v696, %v695
    %v720 = vpack.c.b16 %v698, %v697
    %v721 = vpack.c.b16 %v700, %v699
    %v722 = vpack.c.b16 %v702, %v701
    %v723 = vpack.c.b16 %v704, %v703
    %v724 = vpack.c.b16 %v706, %v705
    %v725 = vpack.c.b16 %v708, %v707
    %v726 = vpack.c.b16 %v710, %v709
    %743 = vmatprep.subr.bf16.mxu0 0
    %744 = vmatpush1.bf16.msra.mxu0 %v711
    %745 = vmatprep.subr.bf16.mxu0 0
    %746 = vmatpush1.bf16.msra.mxu0 %v712
    %747 = vmatprep.subr.bf16.mxu0 0
    %748 = vmatpush1.bf16.msra.mxu0 %v713
    %749 = vmatprep.subr.bf16.mxu0 0
    %750 = vmatpush1.bf16.msra.mxu0 %v714
    %751 = vmatprep.subr.bf16.mxu0 0
    %752 = vmatpush1.bf16.msra.mxu0 %v715
    %753 = vmatprep.subr.bf16.mxu0 0
    %754 = vmatpush1.bf16.msra.mxu0 %v716
    %755 = vmatprep.subr.bf16.mxu0 0
    %756 = vmatpush1.bf16.msra.mxu0 %v717
    %757 = vmatprep.subr.bf16.mxu0 0
    %758 = vmatpush1.bf16.msra.mxu0 %v718
    %759 = vmatprep.subr.bf16.mxu0 0
    %760 = vmatpush1.bf16.msra.mxu0 %v719
    %761 = vmatprep.subr.bf16.mxu0 0
    %762 = vmatpush1.bf16.msra.mxu0 %v720
    %763 = vmatprep.subr.bf16.mxu0 0
    %764 = vmatpush1.bf16.msra.mxu0 %v721
    %765 = vmatprep.subr.bf16.mxu0 0
    %766 = vmatpush1.bf16.msra.mxu0 %v722
    %767 = vmatprep.subr.bf16.mxu0 0
    %768 = vmatpush1.bf16.msra.mxu0 %v723
    %769 = vmatprep.subr.bf16.mxu0 0
    %770 = vmatpush1.bf16.msra.mxu0 %v724
    %771 = vmatprep.subr.bf16.mxu0 0
    %772 = vmatpush1.bf16.msra.mxu0 %v725
    %773 = vmatprep.subr.bf16.mxu0 0
    %774 = vmatpush1.bf16.msra.mxu0 %v726
    %775 = vmatprep.mubr.bf16.mxu0 %v614
    %776 = vmatmul.mubr.bf16.gmra.mrb[0].mxu0 %v613
    %v777 = vpop.f32.mrb[0].mxu0
    %v778 = vadd.f32 %v106, %v777
    %v779 = vpop.f32.mrb[0].mxu0
    %v780 = vpop.f32.mrb[0].mxu0
    %v781 = vadd.f32 %v106, %v780
    %v782 = vpop.f32.mrb[0].mxu0
    %783 = vdwg.mxu0
    %784 = vadd.xlane.f32.xlu0 %v778
    %v785 = vpop.xlane.xlu0 %784
    %786 = vadd.xlane.f32.xlu0 %v781
    %v787 = vpop.xlane.xlu0 %786
    %v788 = vrcp.pop 128.0
    %v789 = vmul.f32 %v785, %v788
    %v790 = vmul.f32 %v787, %v788
    %v791 = vsub.f32 %v778, %v789
    %v792 = vsub.f32 %v781, %v790
    %v793 = vmul.f32 %v791, %v791
    %v794 = vmul.f32 %v792, %v792
    %795 = vadd.xlane.f32.xlu0 %v793
    %v796 = vpop.xlane.xlu0 %795
    %797 = vadd.xlane.f32.xlu0 %v794
    %v798 = vpop.xlane.xlu0 %797
    %v799 = vmul.f32 %v796, %v788
    %v800 = vmul.f32 %v798, %v788
    %v801 = vadd.f32 %v799, 1e-05
    %v802 = vadd.f32 %v800, 1e-05
    %v803 = vrsqrt.pop %v801
    %v804 = vrsqrt.pop %v802
    %v805 = vmul.f32 %v791, %v803
    %v806 = vmul.f32 %v792, %v804
    %v807 = vmul.f32 %v805, %v107
    %v808 = vmul.f32 %v806, %v107
    %v809 = vadd.f32 %v807, %v108
    %v810 = vadd.f32 %v808, %v108
    %v811 = vmax.f32 %v809, 0.0
    %v812 = vmax.f32 %v810, 0.0
    %v813 = vpack.c.bf16 %v812, %v811
    %v814 = vld [vmem:[%s5] sm:$0xf]
    %v815 = vld [vmem:[%s5 + $0x4] sm:$0xf]
    %v816 = vld [vmem:[%s5 + $0x8] sm:$0xf]
    %v817 = vld [vmem:[%s5 + $0xc] sm:$0xf]
    %v818 = vld [vmem:[%s5 + $0x10] sm:$0xf]
    %v819 = vld [vmem:[%s5 + $0x14] sm:$0xf]
    %v820 = vld [vmem:[%s5 + $0x18] sm:$0xf]
    %v821 = vld [vmem:[%s5 + $0x1c] sm:$0xf]
    %v822 = vld [vmem:[%s5 + $0x20] sm:$0xf]
    %v823 = vld [vmem:[%s5 + $0x24] sm:$0xf]
    %v824 = vld [vmem:[%s5 + $0x28] sm:$0xf]
    %v825 = vld [vmem:[%s5 + $0x2c] sm:$0xf]
    %v826 = vld [vmem:[%s5 + $0x30] sm:$0xf]
    %v827 = vld [vmem:[%s5 + $0x34] sm:$0xf]
    %v828 = vld [vmem:[%s5 + $0x38] sm:$0xf]
    %v829 = vld [vmem:[%s5 + $0x3c] sm:$0xf]
    %v846 = vunpack.c.l.b16 %v814
    %v847 = vunpack.c.l.b16 %v815
    %v848 = vunpack.c.l.b16 %v816
    %v849 = vunpack.c.l.b16 %v817
    %v850 = vunpack.c.l.b16 %v818
    %v851 = vunpack.c.l.b16 %v819
    %v852 = vunpack.c.l.b16 %v820
    %v853 = vunpack.c.l.b16 %v821
    %v854 = vunpack.c.l.b16 %v822
    %v855 = vunpack.c.l.b16 %v823
    %v856 = vunpack.c.l.b16 %v824
    %v857 = vunpack.c.l.b16 %v825
    %v858 = vunpack.c.l.b16 %v826
    %v859 = vunpack.c.l.b16 %v827
    %v860 = vunpack.c.l.b16 %v828
    %v861 = vunpack.c.l.b16 %v829
    %v862 = vpack.c.b16 %v847, %v846
    %v863 = vpack.c.b16 %v849, %v848
    %v864 = vpack.c.b16 %v851, %v850
    %v865 = vpack.c.b16 %v853, %v852
    %v866 = vpack.c.b16 %v855, %v854
    %v867 = vpack.c.b16 %v857, %v856
    %v868 = vpack.c.b16 %v859, %v858
    %v869 = vpack.c.b16 %v861, %v860
    %878 = vmatprep.subr.bf16.mxu0 0
    %879 = vmatpush1.bf16.msra.mxu0 %v862
    %880 = vmatprep.subr.bf16.mxu0 0
    %881 = vmatpush1.bf16.msra.mxu0 %v863
    %882 = vmatprep.subr.bf16.mxu0 0
    %883 = vmatpush1.bf16.msra.mxu0 %v864
    %884 = vmatprep.subr.bf16.mxu0 0
    %885 = vmatpush1.bf16.msra.mxu0 %v865
    %886 = vmatprep.subr.bf16.mxu0 0
    %887 = vmatpush1.bf16.msra.mxu0 %v866
    %888 = vmatprep.subr.bf16.mxu0 0
    %889 = vmatpush1.bf16.msra.mxu0 %v867
    %890 = vmatprep.subr.bf16.mxu0 0
    %891 = vmatpush1.bf16.msra.mxu0 %v868
    %892 = vmatprep.subr.bf16.mxu0 0
    %893 = vmatpush1.bf16.msra.mxu0 %v869
    %894 = vmatprep.subr.bf16.mxu0 0
    %895 = vmatpush1.bf16.msra.mxu0 0
    %896 = vmatprep.subr.bf16.mxu0 0
    %897 = vmatpush1.bf16.msra.mxu0 0
    %898 = vmatprep.subr.bf16.mxu0 0
    %899 = vmatpush1.bf16.msra.mxu0 0
    %900 = vmatprep.subr.bf16.mxu0 0
    %901 = vmatpush1.bf16.msra.mxu0 0
    %902 = vmatprep.subr.bf16.mxu0 0
    %903 = vmatpush1.bf16.msra.mxu0 0
    %904 = vmatprep.subr.bf16.mxu0 0
    %905 = vmatpush1.bf16.msra.mxu0 0
    %906 = vmatprep.subr.bf16.mxu0 0
    %907 = vmatpush1.bf16.msra.mxu0 0
    %908 = vmatprep.subr.bf16.mxu0 0
    %909 = vmatpush1.bf16.msra.mxu0 0
    %910 = vmatprep.mubr.bf16.mxu0 0
    %911 = vmatmul.mubr.bf16.gmra.mrb[0].mxu0 %v813
    %v912 = vpop.f32.mrb[0].mxu0
    %v913 = vadd.f32 %v109, %v912
    %v914 = vpop.f32.mrb[0].mxu0
    %v915 = vpop.f32.mrb[0].mxu0
    %v916 = vadd.f32 %v109, %v915
    %v917 = vpop.f32.mrb[0].mxu0
    %918 = vdwg.mxu0
    %vm919 = vcmask 523264
    %v920 = vsel %vm919, %v913, 0.0
    %921 = vadd.xlane.f32.xlu0 %v920
    %v922 = vpop.xlane.xlu0 %921
    %v923 = vsel %vm919, %v916, 0.0
    %924 = vadd.xlane.f32.xlu0 %v923
    %v925 = vpop.xlane.xlu0 %924
    %v926 = vrcp.pop 64.0
    %v927 = vmul.f32 %v922, %v926
    %v928 = vmul.f32 %v925, %v926
    %v929 = vsub.f32 %v913, %v927
    %v930 = vsub.f32 %v916, %v928
    %v931 = vmul.f32 %v929, %v929
    %v932 = vmul.f32 %v930, %v930
    %v933 = vsel %vm919, %v931, 0.0
    %934 = vadd.xlane.f32.xlu0 %v933
    %v935 = vpop.xlane.xlu0 %934
    %v936 = vsel %vm919, %v932, 0.0
    %937 = vadd.xlane.f32.xlu0 %v936
    %v938 = vpop.xlane.xlu0 %937
    %v939 = vmul.f32 %v935, %v926
    %v940 = vmul.f32 %v938, %v926
    %v941 = vadd.f32 %v939, 1e-05
    %v942 = vadd.f32 %v940, 1e-05
    %v943 = vrsqrt.pop %v941
    %v944 = vrsqrt.pop %v942
    %v945 = vmul.f32 %v929, %v943
    %v946 = vmul.f32 %v930, %v944
    %v947 = vmul.f32 %v945, %v110
    %v948 = vmul.f32 %v946, %v110
    %v949 = vadd.f32 %v947, %v111
    %v950 = vadd.f32 %v948, %v111
    %v951 = vmax.f32 %v949, 0.0
    %v952 = vmax.f32 %v950, 0.0
    %v953 = vmul.f32 %v951, %v112
    %v954 = vmul.f32 %v952, %v112
    %v955 = vsel %vm919, %v953, 0.0
    %956 = vadd.xlane.f32.xlu0 %v955
    %v957 = vpop.xlane.xlu0 %956
    %v958 = vsel %vm919, %v954, 0.0
    %959 = vadd.xlane.f32.xlu0 %v958
    %v960 = vpop.xlane.xlu0 %959
    %v961 = vadd.f32 %v957, %v113
    %v962 = vadd.f32 %v960, %v113
    %v963 = vmax.f32 %v961, 0.0
    %v964 = vmax.f32 %v962, 0.0
    %vm965 = vcmask 7168
    %966 = vst.msk [vmem:[%s8] sm:$0xff] %vm965, %v963
    %967 = vst.msk [vmem:[%s8 + $0x8] sm:$0xff] %vm965, %v964
    // Predicated region
    $region54: #{tpu_custom_call.1} parent=1 // pred_check
      _
    $region55: #{tpu_custom_call.1} parent=1 // pred_check_branch
      %969 = sbr.rel (0) target = $region57
    $region56: #{tpu_custom_call.1} parent=1 // pred_region
      _
    $region57: #{tpu_custom_call.1} parent=1 // pred_fallthru
      _
    // Predicated region
    $region58: #{tpu_custom_call.1} parent=1 // pred_check
      _
    $region59: #{tpu_custom_call.1} parent=1 // pred_check_branch
      %971 = sbr.rel (0) target = $region61
    $region60: #{tpu_custom_call.1} parent=1 // pred_region
      _
    $region61: #{tpu_custom_call.1} parent=1 // pred_fallthru
      _
    %972 = vsyncpa [#allocation3], 1
    %973 = vsyncpa [#allocation5], 1
    %974 = vsyncpa [#allocation8], 1

</llo_original>
